<compile_context>
chip_gen: v6e
topology: v6e:2x2x1
jax: 0.10.0
libtpu: 0.0.40
codegen_flags: <defaults>
</compile_context>

<pallas_src>
import functools

import jax
import jax.numpy as jnp
from jax import lax
from jax.experimental import pallas as pl
from jax.experimental.pallas import tpu as pltpu


def _round_up(n: int, m: int) -> int:
    return ((n + m - 1) // m) * m


def _pad_feature(d: int) -> int:
    # 128 lanes when the real dim fits one lane group (full width on v5e's
    # 128x128 MXU); multiples of 256 otherwise so v6e/v7x 256-wide MXU passes
    # are fully used.
    return _round_up(d, 128) if d <= 128 else _round_up(d, 256)


# ---------------------------------------------------------------------------
# Kernel
# ---------------------------------------------------------------------------
def _mlp_kernel(x_ref,                    # (TB, TK)            f32
                w1_ref, b1_ref,           # (TK, H1p) cdt, (1, H1p) f32
                w2_ref, b2_ref,           # (H1p, H2p) cdt, (1, H2p) f32
                w3_ref, b3_ref,           # (H2p, H3p) cdt, (1, H3p) f32
                w4_ref, b4_ref,           # (H3p, Op)  cdt, (1, Op)  f32
                out_ref,                  # (TB, Op)             f32
                acc_ref,                  # (TB, H1p) f32 scratch (fc1 accumulator)
                *, o_dim: int):
    k = pl.program_id(1)
    cdt = w1_ref.dtype                    # matmul operand dtype (bf16 or f32)

    @pl.when(k == 0)
    def _():
        acc_ref[...] = jnp.zeros_like(acc_ref)

    # fc1 partial product for this K slice of input_dim (accumulates over k).
    acc_ref[...] += jnp.dot(x_ref[...].astype(cdt), w1_ref[...],
                            preferred_element_type=jnp.float32)

    @pl.when(k == pl.num_programs(1) - 1)
    def _():
        h = jnp.maximum(acc_ref[...] + b1_ref[...], 0.0)

        h = jnp.dot(h.astype(cdt), w2_ref[...],
                    preferred_element_type=jnp.float32) + b2_ref[...]
        h = jnp.maximum(h, 0.0)

        h = jnp.dot(h.astype(cdt), w3_ref[...],
                    preferred_element_type=jnp.float32) + b3_ref[...]
        h = jnp.maximum(h, 0.0)

        logits = jnp.dot(h.astype(cdt), w4_ref[...],
                         preferred_element_type=jnp.float32) + b4_ref[...]

        # Mask padded class lanes with a large finite negative so they
        # contribute exp(.) == 0 to the softmax sum (no inf/NaN propagation).
        col = lax.broadcasted_iota(jnp.int32, logits.shape, 1)
        logits = jnp.where(col < o_dim, logits, -1e30)

        m = jnp.max(logits, axis=1, keepdims=True)
        e = jnp.exp(logits - m)
        s = jnp.sum(e, axis=1, keepdims=True)
        out_ref[...] = (e * pl.reciprocal(s, approx=True)).astype(out_ref.dtype)


# ---------------------------------------------------------------------------
# Host-side wrappers
# ---------------------------------------------------------------------------
def prepare_params(params, use_bf16: bool = True):
    """Pad/cast weights ONCE (hoisted out of the per-call forward path).

    Weights are stored pre-transposed as (in, out) and padded to lane-aligned
    sizes; matmul-operand dtype is bf16 by default (biases stay f32).
    Returns (padded_params, dims) where dims = (D, H1, H2, H3, O) real sizes.
    """
    w1, b1 = params["w1"], params["b1"]
    w2, b2 = params["w2"], params["b2"]
    w3, b3 = params["w3"], params["b3"]
    w4, b4 = params["w4"], params["b4"]

    D, H1 = w1.shape
    H2, H3, O = w2.shape[1], w3.shape[1], w4.shape[1]
    D_p, H1_p, H2_p, H3_p, O_p = (_pad_feature(d) for d in (D, H1, H2, H3, O))

    wdt = jnp.bfloat16 if use_bf16 else jnp.float32

    def pad_w(w, rows, cols):
        w = jnp.pad(w.astype(jnp.float32),
                    ((0, rows - w.shape[0]), (0, cols - w.shape[1])))
        return w.astype(wdt)

    def pad_b(b, cols):
        return jnp.pad(b.astype(jnp.float32), (0, cols - b.shape[0])).reshape(1, cols)

    pp = {
        "w1": pad_w(w1, D_p, H1_p), "b1": pad_b(b1, H1_p),
        "w2": pad_w(w2, H1_p, H2_p), "b2": pad_b(b2, H2_p),
        "w3": pad_w(w3, H2_p, H3_p), "b3": pad_b(b3, H3_p),
        "w4": pad_w(w4, H3_p, O_p), "b4": pad_b(b4, O_p),
    }
    return pp, (D, H1, H2, H3, O)


def feedforward_forward(x, pp, dims):
    """x: (B, input_dim) f32; pp/dims from prepare_params. Returns (B, output_dim) probs."""
    D, _H1, _H2, _H3, O = dims
    B = x.shape[0]

    D_pad, H1_pad = pp["w1"].shape
    H2_pad = pp["w2"].shape[1]
    H3_pad = pp["w3"].shape[1]
    O_pad = pp["w4"].shape[1]
    w_elem = pp["w1"].dtype.itemsize

    # --- K tiling of fc1 over input_dim (w1 never fully VMEM-resident) -----
    if D_pad <= 512:
        TK = D_pad
    elif D_pad % 512 == 0:
        TK = 512
    elif D_pad % 256 == 0:
        TK = 256
    else:
        TK = 128
    n_k = D_pad // TK

    # --- VMEM budgeting -> batch tile TB ------------------------------------
    w1_resident = TK * H1_pad * (1 if n_k == 1 else 2)     # double-buffered only if k-streamed
    w_bytes = w_elem * (w1_resident + H1_pad * H2_pad + H2_pad * H3_pad + H3_pad * O_pad)
    b_bytes = 4 * (H1_pad + H2_pad + H3_pad + O_pad)
    # per batch-row: x tile (2x), out tile (2x), fc1 accumulator, live activations
    per_row_bytes = 4 * (2 * TK + 2 * O_pad + H1_pad) + 8 * max(H1_pad, H2_pad)
    budget = 48 * 1024 * 1024                               # fits v7x's 64 MiB physical VMEM
    avail = max(budget - w_bytes - b_bytes, 4 * 1024 * 1024)
    tb_cap = max(8, min(512, (avail // per_row_bytes) // 8 * 8))

    B_pad = _round_up(max(B, 8), 8)
    if B_pad <= 8:
        TB = B_pad
    elif B_pad <= 2 * tb_cap:
        # >= 2 batch grid steps so "parallel" can shard across v7x's 2 TensorCores.
        TB = min(tb_cap, _round_up((B_pad + 1) // 2, 8))
        B_pad = _round_up(B_pad, TB)
    else:
        TB = tb_cap
        B_pad = _round_up(B_pad, TB)
    n_b = B_pad // TB

    x_p = jnp.pad(x.astype(jnp.float32), ((0, B_pad - B), (0, D_pad - D)))

    # --- BlockSpecs ----------------------------------------------------------
    const = lambda i, k: (0, 0)
    single = pl.Buffered(1)   # constant-index blocks: no double buffering -> half VMEM

    if n_k == 1:
        w1_spec = pl.BlockSpec((TK, H1_pad), const, pipeline_mode=single)
    else:
        w1_spec = pl.BlockSpec((TK, H1_pad), lambda i, k: (k, 0))

    in_specs = [
        pl.BlockSpec((TB, TK), lambda i, k: (i, k)),                       # x
        w1_spec,
        pl.BlockSpec((1, H1_pad), const, pipeline_mode=single),            # b1
        pl.BlockSpec((H1_pad, H2_pad), const, pipeline_mode=single),       # w2
        pl.BlockSpec((1, H2_pad), const, pipeline_mode=single),            # b2
        pl.BlockSpec((H2_pad, H3_pad), const, pipeline_mode=single),       # w3
        pl.BlockSpec((1, H3_pad), const, pipeline_mode=single),            # b3
        pl.BlockSpec((H3_pad, O_pad), const, pipeline_mode=single),        # w4
        pl.BlockSpec((1, O_pad), const, pipeline_mode=single),             # b4
    ]
    out_spec = pl.BlockSpec((TB, O_pad), lambda i, k: (i, 0))

    # --- Cost estimate & VMEM limit ------------------------------------------
    flops = 2 * B_pad * (D_pad * H1_pad + H1_pad * H2_pad
                         + H2_pad * H3_pad + H3_pad * O_pad)
    bytes_accessed = (B_pad * D_pad * 4
                      + w_elem * (D_pad * H1_pad + H1_pad * H2_pad
                                  + H2_pad * H3_pad + H3_pad * O_pad)
                      + b_bytes + B_pad * O_pad * 4)
    cost = pl.CostEstimate(flops=flops, transcendentals=B_pad * O_pad,
                           bytes_accessed=bytes_accessed)

    vmem_est = int(1.3 * (w_bytes + b_bytes + TB * per_row_bytes))
    vmem_limit = min(64 * 1024 * 1024, max(32 * 1024 * 1024, vmem_est))

    out_pad = pl.pallas_call(
        functools.partial(_mlp_kernel, o_dim=O),
        out_shape=jax.ShapeDtypeStruct((B_pad, O_pad), jnp.float32),
        grid=(n_b, n_k),
        in_specs=in_specs,
        out_specs=out_spec,
        scratch_shapes=[pltpu.VMEM((TB, H1_pad), jnp.float32)],
        compiler_params=pltpu.CompilerParams(
            dimension_semantics=("parallel", "arbitrary"),
            vmem_limit_bytes=vmem_limit),
        cost_estimate=cost,
    )(x_p, pp["w1"], pp["b1"], pp["w2"], pp["b2"],
      pp["w3"], pp["b3"], pp["w4"], pp["b4"])

    return out_pad[:B, :O]


# ---------------------------------------------------------------------------
# Init + reference (for the self-check)
# ---------------------------------------------------------------------------
def init_params(key, input_dim, hidden_dim, output_dim=2):
    """Matches PyTorch nn.Linear default init; weights pre-transposed to (in, out)."""
    dims = [input_dim, hidden_dim, hidden_dim // 2, hidden_dim // 4, output_dim]
    ks = jax.random.split(key, 8)
    params = {}
    for i in range(4):
        fan_in = dims[i]
        bound = 1.0 / (fan_in ** 0.5)
        w = jax.random.uniform(ks[2 * i], (dims[i + 1], dims[i]),
                               jnp.float32, -bound, bound)
        b = jax.random.uniform(ks[2 * i + 1], (dims[i + 1],),
                               jnp.float32, -bound, bound)
        params[f"w{i + 1}"] = w.T
        params[f"b{i + 1}"] = b
    return params


def _reference(x, p):
    h = jnp.maximum(x @ p["w1"] + p["b1"], 0.0)
    h = jnp.maximum(h @ p["w2"] + p["b2"], 0.0)
    h = jnp.maximum(h @ p["w3"] + p["b3"], 0.0)
    logits = h @ p["w4"] + p["b4"]
    return jax.nn.softmax(logits, axis=1)


if __name__ == "__main__":
    B, INPUT_DIM, HIDDEN_DIM, OUTPUT_DIM = 2, 16, 32, 2

    key = jax.random.PRNGKey(0)
    k_x, k_p = jax.random.split(key)
    x = jax.random.normal(k_x, (B, INPUT_DIM), jnp.float32)
    params = init_params(k_p, INPUT_DIM, HIDDEN_DIM, OUTPUT_DIM)
    ref = _reference(x, params)

    fwd = jax.jit(feedforward_forward, static_argnums=2)

    # f32 operand path: near-exact vs. the pure-JAX reference.
    pp32, dims = prepare_params(params, use_bf16=False)
    out32 = jax.block_until_ready(fwd(x, pp32, dims))
    assert out32.shape == (B, OUTPUT_DIM), out32.shape
    assert jnp.allclose(out32, ref, atol=5e-3, rtol=5e-3), (out32, ref)
    assert jnp.allclose(jnp.sum(out32, axis=1), jnp.ones((B,)), atol=1e-2)

    # bf16 operand path (default): relaxed tolerance vs. the f32 reference.
    pp16, dims16 = prepare_params(params, use_bf16=True)
    out16 = jax.block_until_ready(fwd(x, pp16, dims16))
    assert out16.shape == (B, OUTPUT_DIM), out16.shape
    assert jnp.allclose(out16, ref, atol=3e-2, rtol=3e-2), (out16, ref)
    assert jnp.allclose(jnp.sum(out16, axis=1), jnp.ones((B,)), atol=1e-2)

    print("KERNEL_OK")
</pallas_src>

<mosaic_0001>
module attributes {stable_mosaic.version = 11 : i64} {
  func.func @_mlp_kernel(%arg0: i32, %arg1: i32, %arg2: memref<8x128xf32, #tpu.memory_space<vmem>>, %arg3: memref<128x128xf32, #tpu.memory_space<vmem>>, %arg4: memref<1x128xf32, #tpu.memory_space<vmem>>, %arg5: memref<128x128xf32, #tpu.memory_space<vmem>>, %arg6: memref<1x128xf32, #tpu.memory_space<vmem>>, %arg7: memref<128x128xf32, #tpu.memory_space<vmem>>, %arg8: memref<1x128xf32, #tpu.memory_space<vmem>>, %arg9: memref<128x128xf32, #tpu.memory_space<vmem>>, %arg10: memref<1x128xf32, #tpu.memory_space<vmem>>, %arg11: memref<8x128xf32, #tpu.memory_space<vmem>>, %arg12: memref<8x128xf32, #tpu.memory_space<vmem>>) attributes {dimension_semantics = [#tpu.dimension_semantics<parallel>, #tpu.dimension_semantics<arbitrary>], iteration_bounds = array<i64: 1, 1>, scalar_prefetch = 0 : i64, scratch_operands = 1 : i64, tpu.core_type = #tpu.core_type<tc>, window_params = [{transform_indices = @transform_0, window_bounds = array<i64: 8, 128>}, {pipeline_mode = #tpu.pipeline_mode<synchronous>, transform_indices = @transform_1, window_bounds = array<i64: 128, 128>}, {pipeline_mode = #tpu.pipeline_mode<synchronous>, transform_indices = @transform_2, window_bounds = array<i64: 1, 128>}, {pipeline_mode = #tpu.pipeline_mode<synchronous>, transform_indices = @transform_3, window_bounds = array<i64: 128, 128>}, {pipeline_mode = #tpu.pipeline_mode<synchronous>, transform_indices = @transform_4, window_bounds = array<i64: 1, 128>}, {pipeline_mode = #tpu.pipeline_mode<synchronous>, transform_indices = @transform_5, window_bounds = array<i64: 128, 128>}, {pipeline_mode = #tpu.pipeline_mode<synchronous>, transform_indices = @transform_6, window_bounds = array<i64: 1, 128>}, {pipeline_mode = #tpu.pipeline_mode<synchronous>, transform_indices = @transform_7, window_bounds = array<i64: 128, 128>}, {pipeline_mode = #tpu.pipeline_mode<synchronous>, transform_indices = @transform_8, window_bounds = array<i64: 1, 128>}, {transform_indices = @transform_9, window_bounds = array<i64: 8, 128>}]} {
    %c0_i32 = arith.constant 0 : i32
    %0 = arith.cmpi eq, %arg1, %c0_i32 : i32
    %1 = arith.extui %0 : i1 to i32
    %c0_i32_0 = arith.constant 0 : i32
    %2 = arith.cmpi ne, %1, %c0_i32_0 : i32
    scf.if %2 {
      %cst_10 = arith.constant 0.000000e+00 : f32
      %12 = vector.broadcast %cst_10 : f32 to vector<8x128xf32>
      %c0_11 = arith.constant 0 : index
      %c0_12 = arith.constant 0 : index
      %13 = vector.load %arg12[%c0_11, %c0_12] : memref<8x128xf32, #tpu.memory_space<vmem>>, vector<8x128xf32>
      tpu.vector_store %arg12[%c0_11, %c0_12], %12 {strides = array<i32>} : memref<8x128xf32, #tpu.memory_space<vmem>>, vector<8x128xf32>,
    } else {
    }
    %c0 = arith.constant 0 : index
    %c0_1 = arith.constant 0 : index
    %3 = vector.load %arg12[%c0, %c0_1] : memref<8x128xf32, #tpu.memory_space<vmem>>, vector<8x128xf32>
    %c0_2 = arith.constant 0 : index
    %c0_3 = arith.constant 0 : index
    %4 = vector.load %arg2[%c0_2, %c0_3] : memref<8x128xf32, #tpu.memory_space<vmem>>, vector<8x128xf32>
    %c0_4 = arith.constant 0 : index
    %c0_5 = arith.constant 0 : index
    %5 = vector.load %arg3[%c0_4, %c0_5] : memref<128x128xf32, #tpu.memory_space<vmem>>, vector<128x128xf32>
    %cst = arith.constant dense<0.000000e+00> : vector<8x128xf32>
    %6 = tpu.matmul %4, %5, %cst {dimension_numbers = #tpu.dot_dimension_numbers<[1], [0], [0], [1], [0, 0, 1, 1], [], []>} : vector<8x128xf32>, vector<128x128xf32>, vector<8x128xf32> -> vector<8x128xf32>
    %7 = arith.addf %3, %6 : vector<8x128xf32>
    %c0_6 = arith.constant 0 : index
    %c0_7 = arith.constant 0 : index
    %8 = vector.load %arg12[%c0_6, %c0_7] : memref<8x128xf32, #tpu.memory_space<vmem>>, vector<8x128xf32>
    tpu.vector_store %arg12[%c0_6, %c0_7], %7 {strides = array<i32>} : memref<8x128xf32, #tpu.memory_space<vmem>>, vector<8x128xf32>,
    %c0_i32_8 = arith.constant 0 : i32
    %9 = arith.cmpi eq, %arg1, %c0_i32_8 : i32
    %10 = arith.extui %9 : i1 to i32
    %c0_i32_9 = arith.constant 0 : i32
    %11 = arith.cmpi ne, %10, %c0_i32_9 : i32
    scf.if %11 {
      %c0_10 = arith.constant 0 : index
      %c0_11 = arith.constant 0 : index
      %12 = vector.load %arg12[%c0_10, %c0_11] : memref<8x128xf32, #tpu.memory_space<vmem>>, vector<8x128xf32>
      %c0_12 = arith.constant 0 : index
      %c0_13 = arith.constant 0 : index
      %13 = vector.load %arg4[%c0_12, %c0_13] : memref<1x128xf32, #tpu.memory_space<vmem>>, vector<1x128xf32>
      %14 = vector.broadcast %13 : vector<1x128xf32> to vector<8x128xf32>
      %15 = arith.addf %12, %14 : vector<8x128xf32>
      %cst_14 = arith.constant 0.000000e+00 : f32
      %16 = vector.broadcast %cst_14 : f32 to vector<8x128xf32>
      %17 = arith.maximumf %15, %16 : vector<8x128xf32>
      %c0_15 = arith.constant 0 : index
      %c0_16 = arith.constant 0 : index
      %18 = vector.load %arg5[%c0_15, %c0_16] : memref<128x128xf32, #tpu.memory_space<vmem>>, vector<128x128xf32>
      %cst_17 = arith.constant dense<0.000000e+00> : vector<8x128xf32>
      %19 = tpu.matmul %17, %18, %cst_17 {dimension_numbers = #tpu.dot_dimension_numbers<[1], [0], [0], [1], [0, 0, 1, 1], [], []>} : vector<8x128xf32>, vector<128x128xf32>, vector<8x128xf32> -> vector<8x128xf32>
      %c0_18 = arith.constant 0 : index
      %c0_19 = arith.constant 0 : index
      %20 = vector.load %arg6[%c0_18, %c0_19] : memref<1x128xf32, #tpu.memory_space<vmem>>, vector<1x128xf32>
      %21 = vector.broadcast %20 : vector<1x128xf32> to vector<8x128xf32>
      %22 = arith.addf %19, %21 : vector<8x128xf32>
      %cst_20 = arith.constant 0.000000e+00 : f32
      %23 = vector.broadcast %cst_20 : f32 to vector<8x128xf32>
      %24 = arith.maximumf %22, %23 : vector<8x128xf32>
      %c0_21 = arith.constant 0 : index
      %c0_22 = arith.constant 0 : index
      %25 = vector.load %arg7[%c0_21, %c0_22] : memref<128x128xf32, #tpu.memory_space<vmem>>, vector<128x128xf32>
      %cst_23 = arith.constant dense<0.000000e+00> : vector<8x128xf32>
      %26 = tpu.matmul %24, %25, %cst_23 {dimension_numbers = #tpu.dot_dimension_numbers<[1], [0], [0], [1], [0, 0, 1, 1], [], []>} : vector<8x128xf32>, vector<128x128xf32>, vector<8x128xf32> -> vector<8x128xf32>
      %c0_24 = arith.constant 0 : index
      %c0_25 = arith.constant 0 : index
      %27 = vector.load %arg8[%c0_24, %c0_25] : memref<1x128xf32, #tpu.memory_space<vmem>>, vector<1x128xf32>
      %28 = vector.broadcast %27 : vector<1x128xf32> to vector<8x128xf32>
      %29 = arith.addf %26, %28 : vector<8x128xf32>
      %cst_26 = arith.constant 0.000000e+00 : f32
      %30 = vector.broadcast %cst_26 : f32 to vector<8x128xf32>
      %31 = arith.maximumf %29, %30 : vector<8x128xf32>
      %c0_27 = arith.constant 0 : index
      %c0_28 = arith.constant 0 : index
      %32 = vector.load %arg9[%c0_27, %c0_28] : memref<128x128xf32, #tpu.memory_space<vmem>>, vector<128x128xf32>
      %cst_29 = arith.constant dense<0.000000e+00> : vector<8x128xf32>
      %33 = tpu.matmul %31, %32, %cst_29 {dimension_numbers = #tpu.dot_dimension_numbers<[1], [0], [0], [1], [0, 0, 1, 1], [], []>} : vector<8x128xf32>, vector<128x128xf32>, vector<8x128xf32> -> vector<8x128xf32>
      %c0_30 = arith.constant 0 : index
      %c0_31 = arith.constant 0 : index
      %34 = vector.load %arg10[%c0_30, %c0_31] : memref<1x128xf32, #tpu.memory_space<vmem>>, vector<1x128xf32>
      %35 = vector.broadcast %34 : vector<1x128xf32> to vector<8x128xf32>
      %36 = arith.addf %33, %35 : vector<8x128xf32>
      %37 = tpu.iota {dimensions = array<i32: 1>} : vector<8x128xi32>
      %c2_i32 = arith.constant 2 : i32
      %38 = vector.broadcast %c2_i32 : i32 to vector<8x128xi32>
      %39 = arith.cmpi slt, %37, %38 : vector<8x128xi32>
      %cst_32 = arith.constant -1.000000e+30 : f32
      %40 = vector.broadcast %cst_32 : f32 to vector<8x128xf32>
      %41 = arith.select %39, %36, %40 : vector<8x128xi1>, vector<8x128xf32>
      %cst_33 = arith.constant dense<0xFF800000> : vector<8xf32>
      %42 = vector.multi_reduction <maximumf>, %41, %cst_33 [1] : vector<8x128xf32> to vector<8xf32>
      %43 = vector.shape_cast %42 : vector<8xf32> to vector<8x1xf32>
      %44 = vector.broadcast %43 : vector<8x1xf32> to vector<8x128xf32>
      %45 = arith.subf %41, %44 : vector<8x128xf32>
      %46 = math.exp %45 : vector<8x128xf32>
      %cst_34 = arith.constant dense<0.000000e+00> : vector<8xf32>
      %47 = vector.multi_reduction <add>, %46, %cst_34 [1] : vector<8x128xf32> to vector<8xf32>
      %48 = vector.shape_cast %47 : vector<8xf32> to vector<8x1xf32>
      %49 = tpu.reciprocal %48 {approx = true} : vector<8x1xf32> -> vector<8x1xf32>
      %50 = vector.broadcast %49 : vector<8x1xf32> to vector<8x128xf32>
      %51 = arith.mulf %46, %50 : vector<8x128xf32>
      %c0_35 = arith.constant 0 : index
      %c0_36 = arith.constant 0 : index
      %52 = vector.load %arg11[%c0_35, %c0_36] : memref<8x128xf32, #tpu.memory_space<vmem>>, vector<8x128xf32>
      tpu.vector_store %arg11[%c0_35, %c0_36], %51 {strides = array<i32>} : memref<8x128xf32, #tpu.memory_space<vmem>>, vector<8x128xf32>,
    } else {
    }
    return
  }
  func.func @transform_0(%arg0: i32, %arg1: i32) -> (i32, i32) {
    %c0_i32 = arith.constant 0 : i32
    return %arg0, %arg1 : i32, i32
  }
  func.func @transform_1(%arg0: i32, %arg1: i32) -> (i32, i32) {
    %c0_i32 = arith.constant 0 : i32
    %c0_i32_0 = arith.constant 0 : i32
    %c0_i32_1 = arith.constant 0 : i32
    return %c0_i32, %c0_i32_0 : i32, i32
  }
  func.func @transform_2(%arg0: i32, %arg1: i32) -> (i32, i32) {
    %c0_i32 = arith.constant 0 : i32
    %c0_i32_0 = arith.constant 0 : i32
    %c0_i32_1 = arith.constant 0 : i32
    return %c0_i32, %c0_i32_0 : i32, i32
  }
  func.func @transform_3(%arg0: i32, %arg1: i32) -> (i32, i32) {
    %c0_i32 = arith.constant 0 : i32
    %c0_i32_0 = arith.constant 0 : i32
    %c0_i32_1 = arith.constant 0 : i32
    return %c0_i32, %c0_i32_0 : i32, i32
  }
  func.func @transform_4(%arg0: i32, %arg1: i32) -> (i32, i32) {
    %c0_i32 = arith.constant 0 : i32
    %c0_i32_0 = arith.constant 0 : i32
    %c0_i32_1 = arith.constant 0 : i32
    return %c0_i32, %c0_i32_0 : i32, i32
  }
  func.func @transform_5(%arg0: i32, %arg1: i32) -> (i32, i32) {
    %c0_i32 = arith.constant 0 : i32
    %c0_i32_0 = arith.constant 0 : i32
    %c0_i32_1 = arith.constant 0 : i32
    return %c0_i32, %c0_i32_0 : i32, i32
  }
  func.func @transform_6(%arg0: i32, %arg1: i32) -> (i32, i32) {
    %c0_i32 = arith.constant 0 : i32
    %c0_i32_0 = arith.constant 0 : i32
    %c0_i32_1 = arith.constant 0 : i32
    return %c0_i32, %c0_i32_0 : i32, i32
  }
  func.func @transform_7(%arg0: i32, %arg1: i32) -> (i32, i32) {
    %c0_i32 = arith.constant 0 : i32
    %c0_i32_0 = arith.constant 0 : i32
    %c0_i32_1 = arith.constant 0 : i32
    return %c0_i32, %c0_i32_0 : i32, i32
  }
  func.func @transform_8(%arg0: i32, %arg1: i32) -> (i32, i32) {
    %c0_i32 = arith.constant 0 : i32
    %c0_i32_0 = arith.constant 0 : i32
    %c0_i32_1 = arith.constant 0 : i32
    return %c0_i32, %c0_i32_0 : i32, i32
  }
  func.func @transform_9(%arg0: i32, %arg1: i32) -> (i32, i32) {
    %c0_i32 = arith.constant 0 : i32
    %c0_i32_0 = arith.constant 0 : i32
    return %arg0, %c0_i32 : i32, i32
  }
}

</mosaic_0001>

<llo_original>
// kernel: feedforward_forward.1
$region0: #{feedforward_forward.1}
  #allocation0 [shape = 'u32[]', space=smem, size = 0x4, offset = 0x4, fixed_abs, tag = 'smem constant byte address 0x4 - core index']
  #allocation1 [shape = 'u32[144,128]{1,0:T(1,128)}', space=vmem, size = 0x12000, scoped, tag = 'internal scratch']
  #allocation2 [shape = 'f32[8,128]{1,0:T(8,128)}', space=vmem, size = 0x1000, scoped, tag = 'scratch operand']
  %s0 = inlined_call_operand.vmem [shape: f32[8,128], index: 0, kind: input, shape index: {}]
  %s1 = inlined_call_operand.hbm [shape: f32[128,128], index: 1, kind: input, shape index: {}]
  %s2 = inlined_call_operand.vmem [shape: f32[1,128], index: 2, kind: input, shape index: {}]
  %s3 = inlined_call_operand.hbm [shape: f32[128,128], index: 3, kind: input, shape index: {}]
  %s4 = inlined_call_operand.vmem [shape: f32[1,128], index: 4, kind: input, shape index: {}]
  %s5 = inlined_call_operand.hbm [shape: f32[128,128], index: 5, kind: input, shape index: {}]
  %s6 = inlined_call_operand.vmem [shape: f32[1,128], index: 6, kind: input, shape index: {}]
  %s7 = inlined_call_operand.hbm [shape: f32[128,128], index: 7, kind: input, shape index: {}]
  %s8 = inlined_call_operand.vmem [shape: f32[1,128], index: 8, kind: input, shape index: {}]
  %s9 = inlined_call_operand.vmem [shape: f32[8,128], index: 9, kind: output, shape index: {}]
  %s10 = sld [smem:[#allocation0]]
  $region70: #{feedforward_forward.1} parent=0
    _
  %s12 = ssub.s32 1, %s10
  %s13 = scalar_select 0, %s12, %s10
  $region1: #{feedforward_forward.1} parent=0
    #allocation3 [shape = 'u8[65536]{0}', space=vmem, size = 0x10000, scoped, tag = 'input window, operand 1, single buffered']
    #allocation4 [shape = 's32[1]{0}', space=sflag, size = 0x4, scoped, tag = 'scoped memory for feedforward_forward.1']
    #allocation5 [shape = 'u8[65536]{0}', space=vmem, size = 0x10000, scoped, tag = 'input window, operand 3, single buffered']
    #allocation6 [shape = 's32[1]{0}', space=sflag, size = 0x4, scoped, tag = 'scoped memory for feedforward_forward.1']
    #allocation7 [shape = 'u8[65536]{0}', space=vmem, size = 0x10000, scoped, tag = 'input window, operand 5, single buffered']
    #allocation8 [shape = 'u8[65536]{0}', space=vmem, size = 0x10000, scoped, tag = 'input window, operand 7, single buffered']
    #allocation9 [shape = 's32[1]{0}', space=sflag, size = 0x4, scoped, tag = 'scoped memory for feedforward_forward.1']
    %14 = vsyncpa [#allocation4], 0
    %15 = vsyncpa [#allocation6], 0
    %16 = vsyncpa [#allocation9], 0
    // Predicated region
    $region2: #{feedforward_forward.1} parent=1 // pred_check
      _
    $region3: #{feedforward_forward.1} parent=1 // pred_check_branch
      %18 = sbr.rel (0) target = $region5
    $region4: #{feedforward_forward.1} parent=1 // pred_region
      _
    $region5: #{feedforward_forward.1} parent=1 // pred_fallthru
      _
    // Predicated region
    $region6: #{feedforward_forward.1} parent=1 // pred_check
      _
    $region7: #{feedforward_forward.1} parent=1 // pred_check_branch
      %20 = sbr.rel (0) target = $region9
    $region8: #{feedforward_forward.1} parent=1 // pred_region
      %s22 = ssub.s32 2048, 2048
      %23 = vsyncadd [#allocation4], %s22
      %s24 = sshll.u32 [#allocation3], 4
      %s25 = int_to_ptr.vmem [resolvable:$true] %s24
      %30 = dma.hbm_to_vmem [thread:$0]  %s1, 2048, %s25, [#allocation4], 128, 128, 8
    $region9: #{feedforward_forward.1} parent=1 // pred_fallthru
      _
    // Predicated region
    $region10: #{feedforward_forward.1} parent=1 // pred_check
      _
    $region11: #{feedforward_forward.1} parent=1 // pred_check_branch
      %32 = sbr.rel (0) target = $region13
    $region12: #{feedforward_forward.1} parent=1 // pred_region
      _
    $region13: #{feedforward_forward.1} parent=1 // pred_fallthru
      _
    // Predicated region
    $region14: #{feedforward_forward.1} parent=1 // pred_check
      _
    $region15: #{feedforward_forward.1} parent=1 // pred_check_branch
      %34 = sbr.rel (0) target = $region17
    $region16: #{feedforward_forward.1} parent=1 // pred_region
      %s36 = ssub.s32 2048, 2048
      %37 = vsyncadd [#allocation6], %s36
      %s38 = sshll.u32 [#allocation5], 4
      %s39 = int_to_ptr.vmem [resolvable:$true] %s38
      %44 = dma.hbm_to_vmem [thread:$0]  %s3, 2048, %s39, [#allocation6], 128, 128, 8
    $region17: #{feedforward_forward.1} parent=1 // pred_fallthru
      _
    // Predicated region
    $region18: #{feedforward_forward.1} parent=1 // pred_check
      _
    $region19: #{feedforward_forward.1} parent=1 // pred_check_branch
      %46 = sbr.rel (0) target = $region21
    $region20: #{feedforward_forward.1} parent=1 // pred_region
      _
    $region21: #{feedforward_forward.1} parent=1 // pred_fallthru
      _
    // Predicated region
    $region22: #{feedforward_forward.1} parent=1 // pred_check
      _
    $region23: #{feedforward_forward.1} parent=1 // pred_check_branch
      %48 = sbr.rel (0) target = $region25
    $region24: #{feedforward_forward.1} parent=1 // pred_region
      %s50 = ssub.s32 2048, 2048
      %51 = vsyncadd [#allocation6], %s50
      %s52 = sshll.u32 [#allocation7], 4
      %s53 = int_to_ptr.vmem [resolvable:$true] %s52
      %58 = dma.hbm_to_vmem [thread:$0]  %s5, 2048, %s53, [#allocation6], 128, 128, 8
    $region25: #{feedforward_forward.1} parent=1 // pred_fallthru
      _
    // Predicated region
    $region26: #{feedforward_forward.1} parent=1 // pred_check
      _
    $region27: #{feedforward_forward.1} parent=1 // pred_check_branch
      %60 = sbr.rel (0) target = $region29
    $region28: #{feedforward_forward.1} parent=1 // pred_region
      _
    $region29: #{feedforward_forward.1} parent=1 // pred_fallthru
      _
    // Predicated region
    $region30: #{feedforward_forward.1} parent=1 // pred_check
      _
    $region31: #{feedforward_forward.1} parent=1 // pred_check_branch
      %62 = sbr.rel (0) target = $region33
    $region32: #{feedforward_forward.1} parent=1 // pred_region
      %s64 = ssub.s32 2048, 2048
      %65 = vsyncadd [#allocation9], %s64
      %s66 = sshll.u32 [#allocation8], 4
      %s67 = int_to_ptr.vmem [resolvable:$true] %s66
      %72 = dma.hbm_to_vmem [thread:$0]  %s7, 2048, %s67, [#allocation9], 128, 128, 8
    $region33: #{feedforward_forward.1} parent=1 // pred_fallthru
      _
    // Predicated region
    $region34: #{feedforward_forward.1} parent=1 // pred_check
      _
    $region35: #{feedforward_forward.1} parent=1 // pred_check_branch
      %74 = sbr.rel (0) target = $region37
    $region36: #{feedforward_forward.1} parent=1 // pred_region
      _
    $region37: #{feedforward_forward.1} parent=1 // pred_fallthru
      _
    // Predicated region
    $region38: #{feedforward_forward.1} parent=1 // pred_check
      _
    $region39: #{feedforward_forward.1} parent=1 // pred_check_branch
      %76 = sbr.rel (0) target = $region41
    $region40: #{feedforward_forward.1} parent=1 // pred_region
      %77 = dma.done [#allocation4], 2048
    $region41: #{feedforward_forward.1} parent=1 // pred_fallthru
      _
    // Predicated region
    $region42: #{feedforward_forward.1} parent=1 // pred_check
      _
    $region43: #{feedforward_forward.1} parent=1 // pred_check_branch
      %79 = sbr.rel (0) target = $region45
    $region44: #{feedforward_forward.1} parent=1 // pred_region
      %80 = dma.done [#allocation6], 2048
    $region45: #{feedforward_forward.1} parent=1 // pred_fallthru
      _
    // Predicated region
    $region46: #{feedforward_forward.1} parent=1 // pred_check
      _
    $region47: #{feedforward_forward.1} parent=1 // pred_check_branch
      %82 = sbr.rel (0) target = $region49
    $region48: #{feedforward_forward.1} parent=1 // pred_region
      %83 = dma.done [#allocation6], 2048
    $region49: #{feedforward_forward.1} parent=1 // pred_fallthru
      _
    // Predicated region
    $region50: #{feedforward_forward.1} parent=1 // pred_check
      _
    $region51: #{feedforward_forward.1} parent=1 // pred_check_branch
      %85 = sbr.rel (0) target = $region53
    $region52: #{feedforward_forward.1} parent=1 // pred_region
      %86 = dma.done [#allocation9], 2048
    $region53: #{feedforward_forward.1} parent=1 // pred_fallthru
      _
    %p87 = scmp.eq.s32.totalorder 0, 0
    // Predicated region
    $region54: #{feedforward_forward.1} parent=1 // pred_check
      %p88 = pneg %p87
    $region55: #{feedforward_forward.1} parent=1 // pred_check_branch
      %90 = sbr.rel (%p88) target = $region57
    $region56: #{feedforward_forward.1} parent=1 // pred_region
      %91 = vst [vmem:[#allocation2] sm:$0xff] 0.0
    $region57: #{feedforward_forward.1} parent=1 // pred_fallthru
      _
    %v92 = vld [vmem:[#allocation2] sm:$0xff]
    %v93 = vld [vmem:[%s0] sm:$0xff]
    %v94 = vld [vmem:[#allocation3] sm:$0xff]
    %v95 = vld [vmem:[#allocation3 + $0x8] sm:$0xff]
    %v96 = vld [vmem:[#allocation3 + $0x10] sm:$0xff]
    %v97 = vld [vmem:[#allocation3 + $0x18] sm:$0xff]
    %v98 = vld [vmem:[#allocation3 + $0x20] sm:$0xff]
    %v99 = vld [vmem:[#allocation3 + $0x28] sm:$0xff]
    %v100 = vld [vmem:[#allocation3 + $0x30] sm:$0xff]
    %v101 = vld [vmem:[#allocation3 + $0x38] sm:$0xff]
    %v102 = vld [vmem:[#allocation3 + $0x40] sm:$0xff]
    %v103 = vld [vmem:[#allocation3 + $0x48] sm:$0xff]
    %v104 = vld [vmem:[#allocation3 + $0x50] sm:$0xff]
    %v105 = vld [vmem:[#allocation3 + $0x58] sm:$0xff]
    %v106 = vld [vmem:[#allocation3 + $0x60] sm:$0xff]
    %v107 = vld [vmem:[#allocation3 + $0x68] sm:$0xff]
    %v108 = vld [vmem:[#allocation3 + $0x70] sm:$0xff]
    %v109 = vld [vmem:[#allocation3 + $0x78] sm:$0xff]
    %110 = vmatprep.subr.mxu0 0.0
    %111 = vmatpush1.msra.mxu0 %v109
    %112 = vmatprep.subr.mxu0 0.0
    %113 = vmatpush1.msra.mxu0 %v108
    %114 = vmatprep.subr.mxu0 0.0
    %115 = vmatpush1.msra.mxu0 %v107
    %116 = vmatprep.subr.mxu0 0.0
    %117 = vmatpush1.msra.mxu0 %v106
    %118 = vmatprep.subr.mxu0 0.0
    %119 = vmatpush1.msra.mxu0 %v105
    %120 = vmatprep.subr.mxu0 0.0
    %121 = vmatpush1.msra.mxu0 %v104
    %122 = vmatprep.subr.mxu0 0.0
    %123 = vmatpush1.msra.mxu0 %v103
    %124 = vmatprep.subr.mxu0 0.0
    %125 = vmatpush1.msra.mxu0 %v102
    %126 = vmatprep.subr.mxu0 0.0
    %127 = vmatpush1.msra.mxu0 %v101
    %128 = vmatprep.subr.mxu0 0.0
    %129 = vmatpush1.msra.mxu0 %v100
    %130 = vmatprep.subr.mxu0 0.0
    %131 = vmatpush1.msra.mxu0 %v99
    %132 = vmatprep.subr.mxu0 0.0
    %133 = vmatpush1.msra.mxu0 %v98
    %134 = vmatprep.subr.mxu0 0.0
    %135 = vmatpush1.msra.mxu0 %v97
    %136 = vmatprep.subr.mxu0 0.0
    %137 = vmatpush1.msra.mxu0 %v96
    %138 = vmatprep.subr.mxu0 0.0
    %139 = vmatpush1.msra.mxu0 %v95
    %140 = vmatprep.subr.mxu0 0.0
    %141 = vmatpush1.msra.mxu0 %v94
    %142 = vmatprep.subr.mxu0 0.0
    %143 = vmatpush2.msra.mxu0 0.0
    %144 = vmatprep.subr.mxu0 0.0
    %145 = vmatpush2.msra.mxu0 0.0
    %146 = vmatprep.subr.mxu0 0.0
    %147 = vmatpush2.msra.mxu0 0.0
    %148 = vmatprep.subr.mxu0 0.0
    %149 = vmatpush2.msra.mxu0 0.0
    %150 = vmatprep.subr.mxu0 0.0
    %151 = vmatpush2.msra.mxu0 0.0
    %152 = vmatprep.subr.mxu0 0.0
    %153 = vmatpush2.msra.mxu0 0.0
    %154 = vmatprep.subr.mxu0 0.0
    %155 = vmatpush2.msra.mxu0 0.0
    %156 = vmatprep.subr.mxu0 0.0
    %157 = vmatpush2.msra.mxu0 0.0
    %158 = vmatprep.subr.mxu0 0.0
    %159 = vmatpush2.msra.mxu0 0.0
    %160 = vmatprep.subr.mxu0 0.0
    %161 = vmatpush2.msra.mxu0 0.0
    %162 = vmatprep.subr.mxu0 0.0
    %163 = vmatpush2.msra.mxu0 0.0
    %164 = vmatprep.subr.mxu0 0.0
    %165 = vmatpush2.msra.mxu0 0.0
    %166 = vmatprep.subr.mxu0 0.0
    %167 = vmatpush2.msra.mxu0 0.0
    %168 = vmatprep.subr.mxu0 0.0
    %169 = vmatpush2.msra.mxu0 0.0
    %170 = vmatprep.subr.mxu0 0.0
    %171 = vmatpush2.msra.mxu0 0.0
    %172 = vmatprep.subr.mxu0 0.0
    %173 = vmatpush2.msra.mxu0 0.0
    %174 = vmatprep.mubr.f32.mxu0 0.0
    %175 = vmatmul.mubr.f32.gmra.mxu0 %v93
    %v176 = vpop.f32.mrf.mxu0
    %v177 = vadd.f32 0.0, %v176
    %v178 = vpop.f32.mrf.mxu0
    %179 = vdwg.mxu0
    %v180 = vadd.f32 %v92, %v177
    %181 = vst [vmem:[#allocation2] sm:$0xff] %v180
    // Predicated region
    $region58: #{feedforward_forward.1} parent=1 // pred_check
      %p182 = pneg %p87
    $region59: #{feedforward_forward.1} parent=1 // pred_check_branch
      %184 = sbr.rel (%p182) target = $region61
    $region60: #{feedforward_forward.1} parent=1 // pred_region
      %v185 = vld [vmem:[#allocation2] sm:$0xff]
      %v186 = vld [vmem:[%s2] sm:$0x1]
      %v188 = vlaneseq
      %v189 = vshrl.u32 %v188, 7
      %v190 = vsub.s32 0, %v189
      %v191 = vrot.slane %v186, %v190
      %v193 = vadd.f32 %v185, %v191
      %v194 = vmax.f32 %v193, 0.0
      %v195 = vld [vmem:[#allocation5] sm:$0xff]
      %v196 = vld [vmem:[#allocation5 + $0x8] sm:$0xff]
      %v197 = vld [vmem:[#allocation5 + $0x10] sm:$0xff]
      %v198 = vld [vmem:[#allocation5 + $0x18] sm:$0xff]
      %v199 = vld [vmem:[#allocation5 + $0x20] sm:$0xff]
      %v200 = vld [vmem:[#allocation5 + $0x28] sm:$0xff]
      %v201 = vld [vmem:[#allocation5 + $0x30] sm:$0xff]
      %v202 = vld [vmem:[#allocation5 + $0x38] sm:$0xff]
      %v203 = vld [vmem:[#allocation5 + $0x40] sm:$0xff]
      %v204 = vld [vmem:[#allocation5 + $0x48] sm:$0xff]
      %v205 = vld [vmem:[#allocation5 + $0x50] sm:$0xff]
      %v206 = vld [vmem:[#allocation5 + $0x58] sm:$0xff]
      %v207 = vld [vmem:[#allocation5 + $0x60] sm:$0xff]
      %v208 = vld [vmem:[#allocation5 + $0x68] sm:$0xff]
      %v209 = vld [vmem:[#allocation5 + $0x70] sm:$0xff]
      %v210 = vld [vmem:[#allocation5 + $0x78] sm:$0xff]
      %v211 = vld [vmem:[%s4] sm:$0x1]
      %v213 = vlaneseq
      %v214 = vshrl.u32 %v213, 7
      %v215 = vsub.s32 0, %v214
      %v216 = vrot.slane %v211, %v215
      %218 = vmatprep.subr.mxu0 0.0
      %219 = vmatpush1.msra.mxu0 %v210
      %220 = vmatprep.subr.mxu0 0.0
      %221 = vmatpush1.msra.mxu0 %v209
      %222 = vmatprep.subr.mxu0 0.0
      %223 = vmatpush1.msra.mxu0 %v208
      %224 = vmatprep.subr.mxu0 0.0
      %225 = vmatpush1.msra.mxu0 %v207
      %226 = vmatprep.subr.mxu0 0.0
      %227 = vmatpush1.msra.mxu0 %v206
      %228 = vmatprep.subr.mxu0 0.0
      %229 = vmatpush1.msra.mxu0 %v205
      %230 = vmatprep.subr.mxu0 0.0
      %231 = vmatpush1.msra.mxu0 %v204
      %232 = vmatprep.subr.mxu0 0.0
      %233 = vmatpush1.msra.mxu0 %v203
      %234 = vmatprep.subr.mxu0 0.0
      %235 = vmatpush1.msra.mxu0 %v202
      %236 = vmatprep.subr.mxu0 0.0
      %237 = vmatpush1.msra.mxu0 %v201
      %238 = vmatprep.subr.mxu0 0.0
      %239 = vmatpush1.msra.mxu0 %v200
      %240 = vmatprep.subr.mxu0 0.0
      %241 = vmatpush1.msra.mxu0 %v199
      %242 = vmatprep.subr.mxu0 0.0
      %243 = vmatpush1.msra.mxu0 %v198
      %244 = vmatprep.subr.mxu0 0.0
      %245 = vmatpush1.msra.mxu0 %v197
      %246 = vmatprep.subr.mxu0 0.0
      %247 = vmatpush1.msra.mxu0 %v196
      %248 = vmatprep.subr.mxu0 0.0
      %249 = vmatpush1.msra.mxu0 %v195
      %250 = vmatprep.subr.mxu0 0.0
      %251 = vmatpush2.msra.mxu0 0.0
      %252 = vmatprep.subr.mxu0 0.0
      %253 = vmatpush2.msra.mxu0 0.0
      %254 = vmatprep.subr.mxu0 0.0
      %255 = vmatpush2.msra.mxu0 0.0
      %256 = vmatprep.subr.mxu0 0.0
      %257 = vmatpush2.msra.mxu0 0.0
      %258 = vmatprep.subr.mxu0 0.0
      %259 = vmatpush2.msra.mxu0 0.0
      %260 = vmatprep.subr.mxu0 0.0
      %261 = vmatpush2.msra.mxu0 0.0
      %262 = vmatprep.subr.mxu0 0.0
      %263 = vmatpush2.msra.mxu0 0.0
      %264 = vmatprep.subr.mxu0 0.0
      %265 = vmatpush2.msra.mxu0 0.0
      %266 = vmatprep.subr.mxu0 0.0
      %267 = vmatpush2.msra.mxu0 0.0
      %268 = vmatprep.subr.mxu0 0.0
      %269 = vmatpush2.msra.mxu0 0.0
      %270 = vmatprep.subr.mxu0 0.0
      %271 = vmatpush2.msra.mxu0 0.0
      %272 = vmatprep.subr.mxu0 0.0
      %273 = vmatpush2.msra.mxu0 0.0
      %274 = vmatprep.subr.mxu0 0.0
      %275 = vmatpush2.msra.mxu0 0.0
      %276 = vmatprep.subr.mxu0 0.0
      %277 = vmatpush2.msra.mxu0 0.0
      %278 = vmatprep.subr.mxu0 0.0
      %279 = vmatpush2.msra.mxu0 0.0
      %280 = vmatprep.subr.mxu0 0.0
      %281 = vmatpush2.msra.mxu0 0.0
      %282 = vmatprep.mubr.f32.mxu0 0.0
      %283 = vmatmul.mubr.f32.gmra.mxu0 %v194
      %v284 = vpop.f32.mrf.mxu0
      %v285 = vadd.f32 %v216, %v284
      %v286 = vpop.f32.mrf.mxu0
      %287 = vdwg.mxu0
      %v288 = vmax.f32 %v285, 0.0
      %v289 = vld [vmem:[#allocation7] sm:$0xff]
      %v290 = vld [vmem:[#allocation7 + $0x8] sm:$0xff]
      %v291 = vld [vmem:[#allocation7 + $0x10] sm:$0xff]
      %v292 = vld [vmem:[#allocation7 + $0x18] sm:$0xff]
      %v293 = vld [vmem:[#allocation7 + $0x20] sm:$0xff]
      %v294 = vld [vmem:[#allocation7 + $0x28] sm:$0xff]
      %v295 = vld [vmem:[#allocation7 + $0x30] sm:$0xff]
      %v296 = vld [vmem:[#allocation7 + $0x38] sm:$0xff]
      %v297 = vld [vmem:[#allocation7 + $0x40] sm:$0xff]
      %v298 = vld [vmem:[#allocation7 + $0x48] sm:$0xff]
      %v299 = vld [vmem:[#allocation7 + $0x50] sm:$0xff]
      %v300 = vld [vmem:[#allocation7 + $0x58] sm:$0xff]
      %v301 = vld [vmem:[#allocation7 + $0x60] sm:$0xff]
      %v302 = vld [vmem:[#allocation7 + $0x68] sm:$0xff]
      %v303 = vld [vmem:[#allocation7 + $0x70] sm:$0xff]
      %v304 = vld [vmem:[#allocation7 + $0x78] sm:$0xff]
      %v305 = vld [vmem:[%s6] sm:$0x1]
      %v307 = vlaneseq
      %v308 = vshrl.u32 %v307, 7
      %v309 = vsub.s32 0, %v308
      %v310 = vrot.slane %v305, %v309
      %312 = vmatprep.subr.mxu0 0.0
      %313 = vmatpush1.msra.mxu0 %v304
      %314 = vmatprep.subr.mxu0 0.0
      %315 = vmatpush1.msra.mxu0 %v303
      %316 = vmatprep.subr.mxu0 0.0
      %317 = vmatpush1.msra.mxu0 %v302
      %318 = vmatprep.subr.mxu0 0.0
      %319 = vmatpush1.msra.mxu0 %v301
      %320 = vmatprep.subr.mxu0 0.0
      %321 = vmatpush1.msra.mxu0 %v300
      %322 = vmatprep.subr.mxu0 0.0
      %323 = vmatpush1.msra.mxu0 %v299
      %324 = vmatprep.subr.mxu0 0.0
      %325 = vmatpush1.msra.mxu0 %v298
      %326 = vmatprep.subr.mxu0 0.0
      %327 = vmatpush1.msra.mxu0 %v297
      %328 = vmatprep.subr.mxu0 0.0
      %329 = vmatpush1.msra.mxu0 %v296
      %330 = vmatprep.subr.mxu0 0.0
      %331 = vmatpush1.msra.mxu0 %v295
      %332 = vmatprep.subr.mxu0 0.0
      %333 = vmatpush1.msra.mxu0 %v294
      %334 = vmatprep.subr.mxu0 0.0
      %335 = vmatpush1.msra.mxu0 %v293
      %336 = vmatprep.subr.mxu0 0.0
      %337 = vmatpush1.msra.mxu0 %v292
      %338 = vmatprep.subr.mxu0 0.0
      %339 = vmatpush1.msra.mxu0 %v291
      %340 = vmatprep.subr.mxu0 0.0
      %341 = vmatpush1.msra.mxu0 %v290
      %342 = vmatprep.subr.mxu0 0.0
      %343 = vmatpush1.msra.mxu0 %v289
      %344 = vmatprep.subr.mxu0 0.0
      %345 = vmatpush2.msra.mxu0 0.0
      %346 = vmatprep.subr.mxu0 0.0
      %347 = vmatpush2.msra.mxu0 0.0
      %348 = vmatprep.subr.mxu0 0.0
      %349 = vmatpush2.msra.mxu0 0.0
      %350 = vmatprep.subr.mxu0 0.0
      %351 = vmatpush2.msra.mxu0 0.0
      %352 = vmatprep.subr.mxu0 0.0
      %353 = vmatpush2.msra.mxu0 0.0
      %354 = vmatprep.subr.mxu0 0.0
      %355 = vmatpush2.msra.mxu0 0.0
      %356 = vmatprep.subr.mxu0 0.0
      %357 = vmatpush2.msra.mxu0 0.0
      %358 = vmatprep.subr.mxu0 0.0
      %359 = vmatpush2.msra.mxu0 0.0
      %360 = vmatprep.subr.mxu0 0.0
      %361 = vmatpush2.msra.mxu0 0.0
      %362 = vmatprep.subr.mxu0 0.0
      %363 = vmatpush2.msra.mxu0 0.0
      %364 = vmatprep.subr.mxu0 0.0
      %365 = vmatpush2.msra.mxu0 0.0
      %366 = vmatprep.subr.mxu0 0.0
      %367 = vmatpush2.msra.mxu0 0.0
      %368 = vmatprep.subr.mxu0 0.0
      %369 = vmatpush2.msra.mxu0 0.0
      %370 = vmatprep.subr.mxu0 0.0
      %371 = vmatpush2.msra.mxu0 0.0
      %372 = vmatprep.subr.mxu0 0.0
      %373 = vmatpush2.msra.mxu0 0.0
      %374 = vmatprep.subr.mxu0 0.0
      %375 = vmatpush2.msra.mxu0 0.0
      %376 = vmatprep.mubr.f32.mxu0 0.0
      %377 = vmatmul.mubr.f32.gmra.mxu0 %v288
      %v378 = vpop.f32.mrf.mxu0
      %v379 = vadd.f32 %v310, %v378
      %v380 = vpop.f32.mrf.mxu0
      %381 = vdwg.mxu0
      %v382 = vmax.f32 %v379, 0.0
      %v383 = vld [vmem:[#allocation8] sm:$0xff]
      %v384 = vld [vmem:[#allocation8 + $0x8] sm:$0xff]
      %v385 = vld [vmem:[#allocation8 + $0x10] sm:$0xff]
      %v386 = vld [vmem:[#allocation8 + $0x18] sm:$0xff]
      %v387 = vld [vmem:[#allocation8 + $0x20] sm:$0xff]
      %v388 = vld [vmem:[#allocation8 + $0x28] sm:$0xff]
      %v389 = vld [vmem:[#allocation8 + $0x30] sm:$0xff]
      %v390 = vld [vmem:[#allocation8 + $0x38] sm:$0xff]
      %v391 = vld [vmem:[#allocation8 + $0x40] sm:$0xff]
      %v392 = vld [vmem:[#allocation8 + $0x48] sm:$0xff]
      %v393 = vld [vmem:[#allocation8 + $0x50] sm:$0xff]
      %v394 = vld [vmem:[#allocation8 + $0x58] sm:$0xff]
      %v395 = vld [vmem:[#allocation8 + $0x60] sm:$0xff]
      %v396 = vld [vmem:[#allocation8 + $0x68] sm:$0xff]
      %v397 = vld [vmem:[#allocation8 + $0x70] sm:$0xff]
      %v398 = vld [vmem:[#allocation8 + $0x78] sm:$0xff]
      %v399 = vld [vmem:[%s8] sm:$0x1]
      %v401 = vlaneseq
      %v402 = vshrl.u32 %v401, 7
      %v403 = vsub.s32 0, %v402
      %v404 = vrot.slane %v399, %v403
      %406 = vmatprep.subr.mxu0 0.0
      %407 = vmatpush1.msra.mxu0 %v398
      %408 = vmatprep.subr.mxu0 0.0
      %409 = vmatpush1.msra.mxu0 %v397
      %410 = vmatprep.subr.mxu0 0.0
      %411 = vmatpush1.msra.mxu0 %v396
      %412 = vmatprep.subr.mxu0 0.0
      %413 = vmatpush1.msra.mxu0 %v395
      %414 = vmatprep.subr.mxu0 0.0
      %415 = vmatpush1.msra.mxu0 %v394
      %416 = vmatprep.subr.mxu0 0.0
      %417 = vmatpush1.msra.mxu0 %v393
      %418 = vmatprep.subr.mxu0 0.0
      %419 = vmatpush1.msra.mxu0 %v392
      %420 = vmatprep.subr.mxu0 0.0
      %421 = vmatpush1.msra.mxu0 %v391
      %422 = vmatprep.subr.mxu0 0.0
      %423 = vmatpush1.msra.mxu0 %v390
      %424 = vmatprep.subr.mxu0 0.0
      %425 = vmatpush1.msra.mxu0 %v389
      %426 = vmatprep.subr.mxu0 0.0
      %427 = vmatpush1.msra.mxu0 %v388
      %428 = vmatprep.subr.mxu0 0.0
      %429 = vmatpush1.msra.mxu0 %v387
      %430 = vmatprep.subr.mxu0 0.0
      %431 = vmatpush1.msra.mxu0 %v386
      %432 = vmatprep.subr.mxu0 0.0
      %433 = vmatpush1.msra.mxu0 %v385
      %434 = vmatprep.subr.mxu0 0.0
      %435 = vmatpush1.msra.mxu0 %v384
      %436 = vmatprep.subr.mxu0 0.0
      %437 = vmatpush1.msra.mxu0 %v383
      %438 = vmatprep.subr.mxu0 0.0
      %439 = vmatpush2.msra.mxu0 0.0
      %440 = vmatprep.subr.mxu0 0.0
      %441 = vmatpush2.msra.mxu0 0.0
      %442 = vmatprep.subr.mxu0 0.0
      %443 = vmatpush2.msra.mxu0 0.0
      %444 = vmatprep.subr.mxu0 0.0
      %445 = vmatpush2.msra.mxu0 0.0
      %446 = vmatprep.subr.mxu0 0.0
      %447 = vmatpush2.msra.mxu0 0.0
      %448 = vmatprep.subr.mxu0 0.0
      %449 = vmatpush2.msra.mxu0 0.0
      %450 = vmatprep.subr.mxu0 0.0
      %451 = vmatpush2.msra.mxu0 0.0
      %452 = vmatprep.subr.mxu0 0.0
      %453 = vmatpush2.msra.mxu0 0.0
      %454 = vmatprep.subr.mxu0 0.0
      %455 = vmatpush2.msra.mxu0 0.0
      %456 = vmatprep.subr.mxu0 0.0
      %457 = vmatpush2.msra.mxu0 0.0
      %458 = vmatprep.subr.mxu0 0.0
      %459 = vmatpush2.msra.mxu0 0.0
      %460 = vmatprep.subr.mxu0 0.0
      %461 = vmatpush2.msra.mxu0 0.0
      %462 = vmatprep.subr.mxu0 0.0
      %463 = vmatpush2.msra.mxu0 0.0
      %464 = vmatprep.subr.mxu0 0.0
      %465 = vmatpush2.msra.mxu0 0.0
      %466 = vmatprep.subr.mxu0 0.0
      %467 = vmatpush2.msra.mxu0 0.0
      %468 = vmatprep.subr.mxu0 0.0
      %469 = vmatpush2.msra.mxu0 0.0
      %470 = vmatprep.mubr.f32.mxu0 0.0
      %471 = vmatmul.mubr.f32.gmra.mxu0 %v382
      %v472 = vpop.f32.mrf.mxu0
      %v473 = vadd.f32 %v404, %v472
      %v474 = vpop.f32.mrf.mxu0
      %475 = vdwg.mxu0
      %v476 = vlaneseq
      %v477 = vand.u32 %v476, 127
      %vm478 = vcmp.lt.s32.totalorder %v477, 2
      %v479 = vsel %vm478, %v473, -1e+30
      %480 = vmax.xlane.f32.xlu0 %v479
      %v481 = vpop.xlane.xlu0 %480
      %v482 = vsub.f32 %v479, %v481
      %v483 = vmul.f32 %v482, 1.442695
      %v484 = vpow.pop %v483
      %485 = vadd.xlane.f32.xlu0 %v484
      %v486 = vpop.xlane.xlu0 %485
      %v487 = vrcp.pop %v486
      %v488 = vmul.f32 %v484, %v487
      %489 = vst [vmem:[%s9] sm:$0xff] %v488
    $region61: #{feedforward_forward.1} parent=1 // pred_fallthru
      _
    // Predicated region
    $region62: #{feedforward_forward.1} parent=1 // pred_check
      _
    $region63: #{feedforward_forward.1} parent=1 // pred_check_branch
      %491 = sbr.rel (0) target = $region65
    $region64: #{feedforward_forward.1} parent=1 // pred_region
      _
    $region65: #{feedforward_forward.1} parent=1 // pred_fallthru
      _
    // Predicated region
    $region66: #{feedforward_forward.1} parent=1 // pred_check
      _
    $region67: #{feedforward_forward.1} parent=1 // pred_check_branch
      %493 = sbr.rel (0) target = $region69
    $region68: #{feedforward_forward.1} parent=1 // pred_region
      _
    $region69: #{feedforward_forward.1} parent=1 // pred_fallthru
      _
    %494 = vsyncpa [#allocation4], 1
    %495 = vsyncpa [#allocation6], 1
    %496 = vsyncpa [#allocation9], 1

</llo_original>
